<compile_context>
chip_gen: v7x
topology: tpu7x:2x2x1
jax: 0.10.0
libtpu: 0.0.40
codegen_flags: <defaults>
</compile_context>

<pallas_src>
import functools

import jax
import jax.numpy as jnp
import numpy as np
from jax.experimental import pallas as pl
from jax.experimental.pallas import tpu as pltpu


def _vmem_capacity_bytes():
    """Physical VMEM per TensorCore; conservative fallback if the query fails."""
    try:
        cap = getattr(pltpu.get_tpu_info(), "vmem_capacity_bytes", None)
        if cap:
            return int(cap)
    except Exception:
        pass
    return 64 * 1024 * 1024  # v7x-sized fallback: safe on every generation


def _choose_tile(hw, c, pred_bytes, tgt_bytes, resident_budget):
    """Largest multiple-of-128 spatial tile T whose *resident* VMEM footprint
    (2x double-buffered logits block + 2x double-buffered target block + outputs
    + scratch) fits `resident_budget`."""
    # T-independent footprint: double-buffered (1,C,128) f32 output blocks (x2 outputs),
    # two (C,1) f32 scratch accumulators (each padded to >= one (8,128) tile), slack.
    fixed = 2 * 2 * (c * 128 * 4) + 2 * (8 * 128 * 4) + (256 * 1024)
    per_lane = 2 * (c * pred_bytes + tgt_bytes)       # 2x = double-buffered input blocks
    t_max = (max(resident_budget - fixed, 0) // per_lane) // 128 * 128
    t_max = max(128, t_max)
    hw_pad = ((hw + 127) // 128) * 128                # no point tiling wider than HW
    return int(min(t_max, hw_pad))


def _dice_kernel(pred_ref, tgt_ref, inter_ref, den_ref, inter_acc, den_acc,
                 *, hw, tile, tiles_per_chunk, need_mask):
    """One (sample, spatial-chunk, spatial-tile) grid step.

    pred_ref:  (1, C, T) logits tile (native dtype: bf16 or f32).
    tgt_ref:   (1, 1, T) int8/int32 class-index tile.
    inter_ref: (1, C, 128) f32 lane-dense per-(n,p) partial intersection (last tile).
    den_ref:   (1, C, 128) f32 lane-dense per-(n,p) partial denominator (last tile).
    inter_acc/den_acc: (C, 1) f32 VMEM scratch accumulators.
    """
    s_idx = pl.program_id(2)

    @pl.when(s_idx == 0)
    def _():
        inter_acc[...] = jnp.zeros_like(inter_acc)
        den_acc[...] = jnp.zeros_like(den_acc)

    logits = pred_ref[0].astype(jnp.float32)          # (C, T) — widen in-kernel
    tgt = tgt_ref[0].astype(jnp.int32)                # (1, T) — widen in-kernel
    C, T = logits.shape

    if need_mask:
        # Ragged spatial extent: zero contributions from lanes past HW.
        p_idx = pl.program_id(1)
        start = (p_idx * tiles_per_chunk + s_idx) * tile
        lane = jax.lax.broadcasted_iota(jnp.int32, (1, T), 1)
        valid = (lane + start) < hw                    # (1, T) bool
        logits = jnp.where(valid, logits, 0.0)         # also scrubs any OOB garbage

    # Channel softmax (per spatial column => independent per lane, tiling-invariant).
    m = jnp.max(logits, axis=0, keepdims=True)         # (1, T)
    e = jnp.exp(logits - m)                            # (C, T)  (EUP)
    ssum = jnp.sum(e, axis=0, keepdims=True)           # (1, T)
    r = pl.reciprocal(ssum, approx=False)              # (1, T)
    p = e * r                                          # (C, T)

    # In-kernel one-hot: (C,1) class iota broadcast against the (1,T) target row.
    cls = jax.lax.broadcasted_iota(jnp.int32, (C, 1), 0)
    onehot = cls == tgt                                 # (C, T) bool
    if need_mask:
        onehot = jnp.logical_and(onehot, valid)
        p = jnp.where(valid, p, 0.0)
    onehot_f = onehot.astype(jnp.float32)

    # Fused reductions: 2 cross-lane reduces per tile (t*t == t so the one-hot IS
    # its own square; its sum is the per-class valid-pixel count).
    inter_acc[...] += jnp.sum(p * onehot_f, axis=1, keepdims=True)       # (C, 1)
    den_acc[...] += jnp.sum(p * p + onehot_f, axis=1, keepdims=True)     # (C, 1)

    @pl.when(s_idx == pl.num_programs(2) - 1)
    def _():
        # Lane-dense writeback (unmasked vst); finalization happens in plain JAX.
        inter_ref[...] = jnp.broadcast_to(inter_acc[...], (C, 128))[None]
        den_ref[...] = jnp.broadcast_to(den_acc[...], (C, 128))[None]


def dice_loss(predict, target, *, smooth=1.0):
    """predict: [N, C, *spatial] logits (f32 or bf16); target: [N, *spatial] int labels."""
    N, C = predict.shape[0], predict.shape[1]
    HW = int(np.prod(predict.shape[2:]))
    assert target.shape[0] == N and int(np.prod(target.shape[1:])) == HW, \
        "predict/target spatial shapes don't match"

    # Keep native logits dtype (bf16 streams as bf16); widen inside the kernel.
    pred2 = predict.reshape(N, C, HW)
    if not (pred2.dtype == jnp.float32 or pred2.dtype == jnp.bfloat16):
        pred2 = pred2.astype(jnp.float32)

    # Narrow targets (int8 when class ids fit) to cut HBM read traffic at small C.
    tgt_dtype = jnp.int8 if C <= 127 else jnp.int32
    tgt2 = target.reshape(N, 1, HW).astype(tgt_dtype)

    # --- VMEM budgeting (per review): account for double-buffering of BOTH inputs. ---
    vmem_cap = _vmem_capacity_bytes()
    # <= 32 MiB resident on v7x (64 MiB physical), <= 48 MiB on v5e/v6e (128 MiB physical).
    resident_budget = min(vmem_cap // 2, 48 * 1024 * 1024)
    T = _choose_tile(HW, C,
                     pred_bytes=pred2.dtype.itemsize,
                     tgt_bytes=tgt2.dtype.itemsize,
                     resident_budget=resident_budget)
    vmem_limit = int(min(vmem_cap, resident_budget + 16 * 1024 * 1024))

    # --- Grid: (N, P, tiles_per_chunk). P gives v7x megacore work when N is 1/odd. ---
    num_tiles = int(pl.cdiv(HW, T))
    P = 2 if (N % 2 == 1 and num_tiles >= 2) else 1
    tiles_per_chunk = int(pl.cdiv(num_tiles, P))
    need_mask = (P * tiles_per_chunk * T) != HW

    kernel = functools.partial(_dice_kernel, hw=HW, tile=T,
                               tiles_per_chunk=tiles_per_chunk, need_mask=need_mask)

    inter_out, den_out = pl.pallas_call(
        kernel,
        out_shape=(
            jax.ShapeDtypeStruct((N * P, C, 128), jnp.float32),
            jax.ShapeDtypeStruct((N * P, C, 128), jnp.float32),
        ),
        grid_spec=pltpu.PrefetchScalarGridSpec(
            num_scalar_prefetch=0,
            grid=(N, P, tiles_per_chunk),
            in_specs=[
                # If v7x VMEM pressure ever forces small tiles with exposed DMA, add
                # pipeline_mode=pl.Buffered(3) on the logits spec (per review).
                pl.BlockSpec((1, C, T), lambda n, p, s: (n, 0, p * tiles_per_chunk + s)),
                pl.BlockSpec((1, 1, T), lambda n, p, s: (n, 0, p * tiles_per_chunk + s)),
            ],
            out_specs=(
                # Per-(n,p) lane-dense partials; block constant over the spatial axis.
                pl.BlockSpec((1, C, 128), lambda n, p, s: (n * P + p, 0, 0)),
                pl.BlockSpec((1, C, 128), lambda n, p, s: (n * P + p, 0, 0)),
            ),
            scratch_shapes=[
                pltpu.VMEM((C, 1), jnp.float32),   # per-class intersection partials
                pltpu.VMEM((C, 1), jnp.float32),   # per-class denominator partials
            ],
        ),
        compiler_params=pltpu.CompilerParams(
            dimension_semantics=("parallel", "parallel", "arbitrary"),
            vmem_limit_bytes=vmem_limit,
        ),
    )(pred2, tgt2)

    # Finalize (tiny) in plain JAX: combine chunk partials, form dice ratio, reduce.
    inter = inter_out[:, :, 0].reshape(N, P, C).sum(axis=1)     # (N, C)
    den = den_out[:, :, 0].reshape(N, P, C).sum(axis=1)         # (N, C)
    loss_nc = 1.0 - (2.0 * inter + smooth) / (den + smooth)     # (N, C)
    # total_loss = sum_c mean_n(loss_nc) / C == sum_{n,c} loss_nc / (N * C)
    return jnp.sum(loss_nc) / (N * C)


def _reference_dice_loss(predict, target, smooth=1.0):
    """Pure-JAX reference mirroring the PyTorch DiceLoss forward (defaults)."""
    N, C = predict.shape[0], predict.shape[1]
    t = jax.nn.one_hot(target, C, axis=1, dtype=jnp.float32)
    p = jax.nn.softmax(predict.astype(jnp.float32), axis=1)
    p = p.reshape(N, C, -1)
    t = t.reshape(N, C, -1)
    num = 2.0 * jnp.sum(p * t, axis=2) + smooth          # (N, C)
    den = jnp.sum(p * p + t * t, axis=2) + smooth        # (N, C)
    loss_nc = 1.0 - num / den
    return jnp.sum(jnp.mean(loss_nc, axis=0)) / C


if __name__ == "__main__":
    key = jax.random.PRNGKey(0)
    k1, k2 = jax.random.split(key)

    N, C, H, W = 2, 4, 16, 16
    predict = jax.random.normal(k1, (N, C, H, W), dtype=jnp.float32)
    target = jax.random.randint(k2, (N, H, W), 0, C, dtype=jnp.int32)

    # f32 logits path.
    loss = jax.block_until_ready(jax.jit(dice_loss)(predict, target))
    ref = _reference_dice_loss(predict, target)
    np.testing.assert_allclose(np.asarray(loss), np.asarray(ref), rtol=1e-5, atol=1e-6)

    # Native bf16 streaming path (logits stay bf16 in HBM, widened in-kernel).
    predict_bf16 = predict.astype(jnp.bfloat16)
    loss_bf = jax.block_until_ready(jax.jit(dice_loss)(predict_bf16, target))
    ref_bf = _reference_dice_loss(predict_bf16.astype(jnp.float32), target)
    np.testing.assert_allclose(np.asarray(loss_bf), np.asarray(ref_bf), rtol=1e-4, atol=1e-5)

    print("KERNEL_OK")
</pallas_src>

<mosaic_0001>
module attributes {stable_mosaic.version = 11 : i64} {
  func.func @_dice_kernel(%arg0: i32, %arg1: i32, %arg2: i32, %arg3: memref<1x4x256xf32, #tpu.memory_space<vmem>>, %arg4: memref<1x1x256xi8, #tpu.memory_space<vmem>>, %arg5: memref<1x4x128xf32, #tpu.memory_space<vmem>>, %arg6: memref<1x4x128xf32, #tpu.memory_space<vmem>>, %arg7: memref<4x1xf32, #tpu.memory_space<vmem>>, %arg8: memref<4x1xf32, #tpu.memory_space<vmem>>) attributes {dimension_semantics = [#tpu.dimension_semantics<parallel>, #tpu.dimension_semantics<parallel>, #tpu.dimension_semantics<arbitrary>], iteration_bounds = array<i64: 2, 1, 1>, scalar_prefetch = 0 : i64, scratch_operands = 2 : i64, tpu.core_type = #tpu.core_type<tc>, window_params = [{transform_indices = @transform_0, window_bounds = array<i64: 1, 4, 256>}, {transform_indices = @transform_1, window_bounds = array<i64: 1, 1, 256>}, {transform_indices = @transform_2, window_bounds = array<i64: 1, 4, 128>}, {transform_indices = @transform_3, window_bounds = array<i64: 1, 4, 128>}]} {
    %c0_i32 = arith.constant 0 : i32
    %0 = arith.cmpi eq, %arg2, %c0_i32 : i32
    %1 = arith.extui %0 : i1 to i32
    %c0_i32_0 = arith.constant 0 : i32
    %2 = arith.cmpi ne, %1, %c0_i32_0 : i32
    scf.if %2 {
      %cst_19 = arith.constant 0.000000e+00 : f32
      %40 = vector.broadcast %cst_19 : f32 to vector<4x1xf32>
      %c0_20 = arith.constant 0 : index
      %c0_21 = arith.constant 0 : index
      %41 = vector.load %arg7[%c0_20, %c0_21] : memref<4x1xf32, #tpu.memory_space<vmem>>, vector<4x1xf32>
      tpu.vector_store %arg7[%c0_20, %c0_21], %40 {strides = array<i32>} : memref<4x1xf32, #tpu.memory_space<vmem>>, vector<4x1xf32>,
      %cst_22 = arith.constant 0.000000e+00 : f32
      %42 = vector.broadcast %cst_22 : f32 to vector<4x1xf32>
      %c0_23 = arith.constant 0 : index
      %c0_24 = arith.constant 0 : index
      %43 = vector.load %arg8[%c0_23, %c0_24] : memref<4x1xf32, #tpu.memory_space<vmem>>, vector<4x1xf32>
      tpu.vector_store %arg8[%c0_23, %c0_24], %42 {strides = array<i32>} : memref<4x1xf32, #tpu.memory_space<vmem>>, vector<4x1xf32>,
    } else {
    }
    %c0 = arith.constant 0 : index
    %c0_1 = arith.constant 0 : index
    %c0_2 = arith.constant 0 : index
    %3 = vector.load %arg3[%c0, %c0_1, %c0_2] : memref<1x4x256xf32, #tpu.memory_space<vmem>>, vector<1x4x256xf32>
    %4 = vector.shape_cast %3 : vector<1x4x256xf32> to vector<4x256xf32>
    %c0_3 = arith.constant 0 : index
    %c0_4 = arith.constant 0 : index
    %c0_5 = arith.constant 0 : index
    %5 = vector.load %arg4[%c0_3, %c0_4, %c0_5] : memref<1x1x256xi8, #tpu.memory_space<vmem>>, vector<1x1x256xi8>
    %6 = vector.shape_cast %5 : vector<1x1x256xi8> to vector<1x256xi8>
    %7 = arith.extsi %6 : vector<1x256xi8> to vector<1x256xi32>
    %cst = arith.constant dense<0xFF800000> : vector<256xf32>
    %8 = vector.multi_reduction <maximumf>, %4, %cst [0] : vector<4x256xf32> to vector<256xf32>
    %9 = vector.shape_cast %8 : vector<256xf32> to vector<1x256xf32>
    %10 = vector.broadcast %9 : vector<1x256xf32> to vector<4x256xf32>
    %11 = arith.subf %4, %10 : vector<4x256xf32>
    %12 = math.exp %11 : vector<4x256xf32>
    %cst_6 = arith.constant dense<0.000000e+00> : vector<256xf32>
    %13 = vector.multi_reduction <add>, %12, %cst_6 [0] : vector<4x256xf32> to vector<256xf32>
    %14 = vector.shape_cast %13 : vector<256xf32> to vector<1x256xf32>
    %15 = tpu.reciprocal %14 : vector<1x256xf32> -> vector<1x256xf32>
    %16 = vector.broadcast %15 : vector<1x256xf32> to vector<4x256xf32>
    %17 = arith.mulf %12, %16 : vector<4x256xf32>
    %18 = tpu.iota {dimensions = array<i32: 0>} : vector<4x1xi32>
    %19 = vector.broadcast %18 : vector<4x1xi32> to vector<4x256xi32>
    %20 = vector.broadcast %7 : vector<1x256xi32> to vector<4x256xi32>
    %21 = arith.cmpi eq, %19, %20 : vector<4x256xi32>
    %22 = arith.extui %21 : vector<4x256xi1> to vector<4x256xi32>
    %23 = arith.sitofp %22 : vector<4x256xi32> to vector<4x256xf32>
    %c0_7 = arith.constant 0 : index
    %c0_8 = arith.constant 0 : index
    %24 = vector.load %arg7[%c0_7, %c0_8] : memref<4x1xf32, #tpu.memory_space<vmem>>, vector<4x1xf32>
    %25 = arith.mulf %17, %23 : vector<4x256xf32>
    %cst_9 = arith.constant dense<0.000000e+00> : vector<4xf32>
    %26 = vector.multi_reduction <add>, %25, %cst_9 [1] : vector<4x256xf32> to vector<4xf32>
    %27 = vector.shape_cast %26 : vector<4xf32> to vector<4x1xf32>
    %28 = arith.addf %24, %27 : vector<4x1xf32>
    %c0_10 = arith.constant 0 : index
    %c0_11 = arith.constant 0 : index
    %29 = vector.load %arg7[%c0_10, %c0_11] : memref<4x1xf32, #tpu.memory_space<vmem>>, vector<4x1xf32>
    tpu.vector_store %arg7[%c0_10, %c0_11], %28 {strides = array<i32>} : memref<4x1xf32, #tpu.memory_space<vmem>>, vector<4x1xf32>,
    %c0_12 = arith.constant 0 : index
    %c0_13 = arith.constant 0 : index
    %30 = vector.load %arg8[%c0_12, %c0_13] : memref<4x1xf32, #tpu.memory_space<vmem>>, vector<4x1xf32>
    %31 = arith.mulf %17, %17 : vector<4x256xf32>
    %32 = arith.addf %31, %23 : vector<4x256xf32>
    %cst_14 = arith.constant dense<0.000000e+00> : vector<4xf32>
    %33 = vector.multi_reduction <add>, %32, %cst_14 [1] : vector<4x256xf32> to vector<4xf32>
    %34 = vector.shape_cast %33 : vector<4xf32> to vector<4x1xf32>
    %35 = arith.addf %30, %34 : vector<4x1xf32>
    %c0_15 = arith.constant 0 : index
    %c0_16 = arith.constant 0 : index
    %36 = vector.load %arg8[%c0_15, %c0_16] : memref<4x1xf32, #tpu.memory_space<vmem>>, vector<4x1xf32>
    tpu.vector_store %arg8[%c0_15, %c0_16], %35 {strides = array<i32>} : memref<4x1xf32, #tpu.memory_space<vmem>>, vector<4x1xf32>,
    %c0_i32_17 = arith.constant 0 : i32
    %37 = arith.cmpi eq, %arg2, %c0_i32_17 : i32
    %38 = arith.extui %37 : i1 to i32
    %c0_i32_18 = arith.constant 0 : i32
    %39 = arith.cmpi ne, %38, %c0_i32_18 : i32
    scf.if %39 {
      %c0_19 = arith.constant 0 : index
      %c0_20 = arith.constant 0 : index
      %40 = vector.load %arg7[%c0_19, %c0_20] : memref<4x1xf32, #tpu.memory_space<vmem>>, vector<4x1xf32>
      %41 = vector.shape_cast %40 : vector<4x1xf32> to vector<4x1xf32>
      %42 = vector.broadcast %41 : vector<4x1xf32> to vector<4x128xf32>
      %43 = vector.shape_cast %42 : vector<4x128xf32> to vector<1x4x128xf32>
      %c0_21 = arith.constant 0 : index
      %c0_22 = arith.constant 0 : index
      %c0_23 = arith.constant 0 : index
      %44 = vector.load %arg5[%c0_21, %c0_22, %c0_23] : memref<1x4x128xf32, #tpu.memory_space<vmem>>, vector<1x4x128xf32>
      tpu.vector_store %arg5[%c0_21, %c0_22, %c0_23], %43 {strides = array<i32>} : memref<1x4x128xf32, #tpu.memory_space<vmem>>, vector<1x4x128xf32>,
      %c0_24 = arith.constant 0 : index
      %c0_25 = arith.constant 0 : index
      %45 = vector.load %arg8[%c0_24, %c0_25] : memref<4x1xf32, #tpu.memory_space<vmem>>, vector<4x1xf32>
      %46 = vector.shape_cast %45 : vector<4x1xf32> to vector<4x1xf32>
      %47 = vector.broadcast %46 : vector<4x1xf32> to vector<4x128xf32>
      %48 = vector.shape_cast %47 : vector<4x128xf32> to vector<1x4x128xf32>
      %c0_26 = arith.constant 0 : index
      %c0_27 = arith.constant 0 : index
      %c0_28 = arith.constant 0 : index
      %49 = vector.load %arg6[%c0_26, %c0_27, %c0_28] : memref<1x4x128xf32, #tpu.memory_space<vmem>>, vector<1x4x128xf32>
      tpu.vector_store %arg6[%c0_26, %c0_27, %c0_28], %48 {strides = array<i32>} : memref<1x4x128xf32, #tpu.memory_space<vmem>>, vector<1x4x128xf32>,
    } else {
    }
    return
  }
  func.func @transform_0(%arg0: i32, %arg1: i32, %arg2: i32) -> (i32, i32, i32) {
    %c1_i32 = arith.constant 1 : i32
    %0 = arith.muli %arg1, %c1_i32 : i32
    %1 = arith.addi %0, %arg2 : i32
    %c0_i32 = arith.constant 0 : i32
    %c0_i32_0 = arith.constant 0 : i32
    return %arg0, %c0_i32, %1 : i32, i32, i32
  }
  func.func @transform_1(%arg0: i32, %arg1: i32, %arg2: i32) -> (i32, i32, i32) {
    %c1_i32 = arith.constant 1 : i32
    %0 = arith.muli %arg1, %c1_i32 : i32
    %1 = arith.addi %0, %arg2 : i32
    %c0_i32 = arith.constant 0 : i32
    %c0_i32_0 = arith.constant 0 : i32
    return %arg0, %c0_i32, %1 : i32, i32, i32
  }
  func.func @transform_2(%arg0: i32, %arg1: i32, %arg2: i32) -> (i32, i32, i32) {
    %c1_i32 = arith.constant 1 : i32
    %0 = arith.muli %arg0, %c1_i32 : i32
    %1 = arith.addi %0, %arg1 : i32
    %c0_i32 = arith.constant 0 : i32
    %c0_i32_0 = arith.constant 0 : i32
    %c0_i32_1 = arith.constant 0 : i32
    return %1, %c0_i32, %c0_i32_0 : i32, i32, i32
  }
  func.func @transform_3(%arg0: i32, %arg1: i32, %arg2: i32) -> (i32, i32, i32) {
    %c1_i32 = arith.constant 1 : i32
    %0 = arith.muli %arg0, %c1_i32 : i32
    %1 = arith.addi %0, %arg1 : i32
    %c0_i32 = arith.constant 0 : i32
    %c0_i32_0 = arith.constant 0 : i32
    %c0_i32_1 = arith.constant 0 : i32
    return %1, %c0_i32, %c0_i32_0 : i32, i32, i32
  }
}

</mosaic_0001>

<llo_original>
// kernel: dice_loss.1
$region0: #{dice_loss.1}
  #allocation0 [shape = 'u32[]', space=smem, size = 0x4, offset = 0x4, fixed_abs, tag = 'smem constant byte address 0x4 - core index']
  #allocation1 [shape = 'u32[144,128]{1,0:T(1,128)}', space=vmem, size = 0x12000, scoped, tag = 'internal scratch']
  #allocation2 [shape = 'f32[4,1]{1,0:T(4,128)}', space=vmem, size = 0x800, scoped, tag = 'scratch operand']
  #allocation3 [shape = 'f32[4,1]{1,0:T(4,128)}', space=vmem, size = 0x800, scoped, tag = 'scratch operand']
  %s0 = inlined_call_operand.vmem [shape: f32[2,4,256], index: 0, kind: input, shape index: {}]
  %s1 = inlined_call_operand.vmem [shape: s8[2,1,256], index: 1, kind: input, shape index: {}]
  %s2 = inlined_call_operand.vmem [shape: f32[2,4,128], index: 2, kind: output, shape index: {0}]
  %s3 = inlined_call_operand.vmem [shape: f32[2,4,128], index: 3, kind: output, shape index: {1}]
  %4 = xla_tuple %s2, %s3
  %s5 = sld [smem:[#allocation0]]
  $region57: #{dice_loss.1} parent=0
    _
  %s7 = ssub.s32 1, %s5
  %s8 = scalar_select 0, %s7, %s5
  loop: start=0, step=1, limit=4
  $region2: #{dice_loss.1} parent=0 // loop_pre_header
    _
  $region3: #{dice_loss.1} parent=0 // loop_header
    %s10 = sphi 0, %s14
    %p11 = scmp.ge.s32.totalorder %s10, 4
    %s17 = sphi 0, %s36
    %s18 = sphi 0, %s32
    %s19 = sphi 0, %s28
    %s20 = sphi 0, %s17
    %s21 = sphi 0, %s18
    %s22 = sphi 0, %s19
    %s23 = sphi 0, %s20
    %s24 = sphi 0, %s21
    %s25 = sphi 0, %s22
    %s43 = sphi 0, %s45
    %s46 = sphi 0, %s43
    %s47 = sphi 0, %s46
    %s63 = sphi 0, %s47
    %s73 = sphi 0, %s75
    %s76 = sphi 0, %s73
    %s77 = sphi 0, %s76
    %s93 = sphi 0, %s77
    %s101 = sphi 0, %s103
    %s104 = sphi 0, %s101
    %s105 = sphi 0, %s104
    %s121 = sphi 0, %s105
    %s129 = sphi 0, %s131
    %s132 = sphi 0, %s129
    %s133 = sphi 0, %s132
    %s149 = sphi 0, %s133
  $region4: #{dice_loss.1} parent=0 // loop_header_branch
    %13 = sbr.rel (%p11) target = $region8
  $region5: #{dice_loss.1} parent=0 // loop_body
    %s15 = ssub.s32 %s10, 1
    %s16 = ssub.s32 %s10, 2
    %s26 = sadd.s32 1, %s19
    %p27 = scmp.ge.s32.totalorder %s26, 1
    %s28 = scalar_select %p27, 0, %s26
    %s29 = sadd.s32 1, %s18
    %s30 = scalar_select %p27, %s29, %s18
    %p31 = scmp.ge.s32.totalorder %s30, 1
    %s32 = scalar_select %p31, 0, %s30
    %s33 = sadd.s32 1, %s17
    %s34 = scalar_select %p31, %s33, %s17
    %p35 = scmp.ge.s32.totalorder %s34, 2
    %s36 = scalar_select %p35, 0, %s34
    %s37 = sadd.s32 %s18, %s19
    %s38 = sadd.s32 %s32, %s28
    %s39 = ssub.s32 %s17, %s36
    %s40 = ssub.s32 %s37, %s38
    %s41 = sor.u32 %s39, %s40
    %p42 = scmp.eq.s32.totalorder %s41, 0
    %s44 = sadd.s32 %s43, 1
    %s45 = scalar_select %p42, %s43, %s44
    %p48 = pneg %p42
    %p49 = scmp.eq.s32.totalorder %s10, 1
    %p50 = por %p48, %p49
    %p51 = scmp.ne.s32.totalorder %s43, %s46
    %p52 = scmp.eq.s32.totalorder %s10, 0
    %p53 = por %p51, %p52
    %p54 = scmp.ne.s32.totalorder %s43, %s46
    %p55 = scmp.eq.s32.totalorder %s15, 1
    %p56 = por %p54, %p55
    %p57 = scmp.ne.s32.totalorder %s46, %s47
    %p58 = scmp.eq.s32.totalorder %s15, 0
    %p59 = por %p57, %p58
    %p60 = scmp.ne.s32.totalorder %s46, %s47
    %p61 = scmp.eq.s32.totalorder %s16, 1
    %p62 = por %p60, %p61
    %p64 = scmp.ne.s32.totalorder %s47, %s63
    %p65 = scmp.eq.s32.totalorder %s16, 0
    %p66 = por %p64, %p65
    %s67 = sadd.s32 %s18, %s19
    %s68 = sadd.s32 %s32, %s28
    %s69 = ssub.s32 %s17, %s36
    %s70 = ssub.s32 %s67, %s68
    %s71 = sor.u32 %s69, %s70
    %p72 = scmp.eq.s32.totalorder %s71, 0
    %s74 = sadd.s32 %s73, 1
    %s75 = scalar_select %p72, %s73, %s74
    %p78 = pneg %p72
    %p79 = scmp.eq.s32.totalorder %s10, 1
    %p80 = por %p78, %p79
    %p81 = scmp.ne.s32.totalorder %s73, %s76
    %p82 = scmp.eq.s32.totalorder %s10, 0
    %p83 = por %p81, %p82
    %p84 = scmp.ne.s32.totalorder %s73, %s76
    %p85 = scmp.eq.s32.totalorder %s15, 1
    %p86 = por %p84, %p85
    %p87 = scmp.ne.s32.totalorder %s76, %s77
    %p88 = scmp.eq.s32.totalorder %s15, 0
    %p89 = por %p87, %p88
    %p90 = scmp.ne.s32.totalorder %s76, %s77
    %p91 = scmp.eq.s32.totalorder %s16, 1
    %p92 = por %p90, %p91
    %p94 = scmp.ne.s32.totalorder %s77, %s93
    %p95 = scmp.eq.s32.totalorder %s16, 0
    %p96 = por %p94, %p95
    %s97 = sadd.s32 %s17, %s18
    %s98 = sadd.s32 %s36, %s32
    %s99 = ssub.s32 %s97, %s98
    %p100 = scmp.eq.s32.totalorder %s99, 0
    %s102 = sadd.s32 %s101, 1
    %s103 = scalar_select %p100, %s101, %s102
    %p106 = pneg %p100
    %p107 = scmp.eq.s32.totalorder %s10, 1
    %p108 = por %p106, %p107
    %p109 = scmp.ne.s32.totalorder %s101, %s104
    %p110 = scmp.eq.s32.totalorder %s10, 0
    %p111 = por %p109, %p110
    %p112 = scmp.ne.s32.totalorder %s101, %s104
    %p113 = scmp.eq.s32.totalorder %s15, 1
    %p114 = por %p112, %p113
    %p115 = scmp.ne.s32.totalorder %s104, %s105
    %p116 = scmp.eq.s32.totalorder %s15, 0
    %p117 = por %p115, %p116
    %p118 = scmp.ne.s32.totalorder %s104, %s105
    %p119 = scmp.eq.s32.totalorder %s16, 1
    %p120 = por %p118, %p119
    %p122 = scmp.ne.s32.totalorder %s105, %s121
    %p123 = scmp.eq.s32.totalorder %s16, 0
    %p124 = por %p122, %p123
    %s125 = sadd.s32 %s17, %s18
    %s126 = sadd.s32 %s36, %s32
    %s127 = ssub.s32 %s125, %s126
    %p128 = scmp.eq.s32.totalorder %s127, 0
    %s130 = sadd.s32 %s129, 1
    %s131 = scalar_select %p128, %s129, %s130
    %p134 = pneg %p128
    %p135 = scmp.eq.s32.totalorder %s10, 1
    %p136 = por %p134, %p135
    %p137 = scmp.ne.s32.totalorder %s129, %s132
    %p138 = scmp.eq.s32.totalorder %s10, 0
    %p139 = por %p137, %p138
    %p140 = scmp.ne.s32.totalorder %s129, %s132
    %p141 = scmp.eq.s32.totalorder %s15, 1
    %p142 = por %p140, %p141
    %p143 = scmp.ne.s32.totalorder %s132, %s133
    %p144 = scmp.eq.s32.totalorder %s15, 0
    %p145 = por %p143, %p144
    %p146 = scmp.ne.s32.totalorder %s132, %s133
    %p147 = scmp.eq.s32.totalorder %s16, 1
    %p148 = por %p146, %p147
    %p150 = scmp.ne.s32.totalorder %s133, %s149
    %p151 = scmp.eq.s32.totalorder %s16, 0
    %p152 = por %p150, %p151
    %p153 = scmp.le.s32.totalorder 1, %s10
    %p154 = scmp.lt.s32.totalorder %s10, 3
    %p155 = pnand %p153, %p154
    %p156 = pneg %p155
    // Predicated region
    $region9: #{dice_loss.1} parent=5 // pred_check
      _
    $region10: #{dice_loss.1} parent=5 // pred_check_branch
      %158 = sbr.rel (%p155) target = $region12
    $region11: #{dice_loss.1} parent=5 // pred_region
      %s159 = ssub.s32 %s10, 1
    $region12: #{dice_loss.1} parent=5 // pred_fallthru
      _
    %p160 = scmp.lt.s32.totalorder %s10, 2
    // Predicated region
    $region13: #{dice_loss.1} parent=5 // pred_check
      %p161 = pneg %p160
    $region14: #{dice_loss.1} parent=5 // pred_check_branch
      %163 = sbr.rel (%p161) target = $region16
    $region15: #{dice_loss.1} parent=5 // pred_region
      // Predicated region
      $region17: #{dice_loss.1} parent=15 // pred_check
        %p164 = pneg %p53
      $region18: #{dice_loss.1} parent=15 // pred_check_branch
        %166 = sbr.rel (%p164) target = $region20
      $region19: #{dice_loss.1} parent=15 // pred_region
        %s167 = sadd.s32 %s18, %s19
        %s168 = smul.u32 2, %s167
        %p169 = scmp.lt.s32.totalorder %s17, 1
        %s170 = scalar_select %p169, %s17, 1
        %p171 = scmp.lt.s32.totalorder %s168, 1
        %s172 = scalar_select %p171, %s168, 1
        %s173 = smul.addr %s170, 2
        %s174 = sadd.s32 %s172, %s173
        %s175 = smul.addr %s174, 4
        %s176 = scalar_lea.vmem %s0, %s175
        %s177 = sadd.s32 %s18, %s19
        %s178 = smul.u32 2, %s177
      $region20: #{dice_loss.1} parent=15 // pred_fallthru
        _
      // Predicated region
      $region21: #{dice_loss.1} parent=15 // pred_check
        %p179 = pneg %p83
      $region22: #{dice_loss.1} parent=15 // pred_check_branch
        %181 = sbr.rel (%p179) target = $region24
      $region23: #{dice_loss.1} parent=15 // pred_region
        %s182 = sadd.s32 %s18, %s19
        %s183 = smul.u32 2, %s182
        %p184 = scmp.lt.s32.totalorder %s17, 1
        %s185 = scalar_select %p184, %s17, 1
        %p186 = scmp.lt.s32.totalorder %s183, 1
        %s187 = scalar_select %p186, %s183, 1
        %s188 = smul.addr %s185, 2
        %s189 = sadd.s32 %s187, %s188
        %s190 = scalar_lea.vmem %s1, %s189
        %s191 = sadd.s32 %s18, %s19
        %s192 = smul.u32 2, %s191
      $region24: #{dice_loss.1} parent=15 // pred_fallthru
        _
    $region16: #{dice_loss.1} parent=5 // pred_fallthru
      _
    %p193 = scmp.le.s32.totalorder 1, %s10
    %p194 = scmp.lt.s32.totalorder %s10, 3
    %p195 = pnand %p193, %p194
    %p196 = pneg %p195
    // Predicated region
    $region25: #{dice_loss.1} parent=5 // pred_check
      _
    $region26: #{dice_loss.1} parent=5 // pred_check_branch
      %198 = sbr.rel (%p195) target = $region28
    $region27: #{dice_loss.1} parent=5 // pred_region
      %s199 = ssub.s32 %s10, 1
      %s200 = sadd.s32 %s21, %s22
      %s201 = smul.u32 2, %s200
      %p202 = scmp.lt.s32.totalorder %s20, 1
      %s203 = scalar_select %p202, %s20, 1
      %p204 = scmp.lt.s32.totalorder %s201, 1
      %s205 = scalar_select %p204, %s201, 1
      %s206 = smul.addr %s203, 2
      %s207 = sadd.s32 %s205, %s206
      %s208 = smul.addr %s207, 4
      %s209 = scalar_lea.vmem %s0, %s208
      %p210 = pneg %p59
      %p211 = pneg %p56
      %s212 = sadd.s32 %s21, %s22
      %s213 = smul.u32 2, %s212
      %p214 = scmp.lt.s32.totalorder %s20, 1
      %s215 = scalar_select %p214, %s20, 1
      %p216 = scmp.lt.s32.totalorder %s213, 1
      %s217 = scalar_select %p216, %s213, 1
      %s218 = smul.addr %s215, 2
      %s219 = sadd.s32 %s217, %s218
      %s220 = scalar_lea.vmem %s1, %s219
      %p221 = pneg %p89
      %p222 = pneg %p86
      %p223 = pneg %p117
      %p224 = pneg %p114
      %s225 = sadd.s32 %s20, %s21
      %p226 = scmp.lt.s32.totalorder %s225, 1
      %s227 = scalar_select %p226, %s225, 1
      %s228 = smul.addr %s227, 4
      %s229 = scalar_lea.vmem %s2, %s228
      %p230 = pneg %p145
      %p231 = pneg %p142
      %s232 = sadd.s32 %s20, %s21
      %p233 = scmp.lt.s32.totalorder %s232, 1
      %s234 = scalar_select %p233, %s232, 1
      %s235 = smul.addr %s234, 4
      %s236 = scalar_lea.vmem %s3, %s235
      %s237 = sadd.s32 %s21, %s22
      %s238 = smul.u32 2, %s237
      %p239 = scmp.lt.s32.totalorder %s20, 1
      %s240 = scalar_select %p239, %s20, 1
      %p241 = scmp.lt.s32.totalorder %s238, 1
      %s242 = scalar_select %p241, %s238, 1
      %s243 = smul.addr %s240, 2
      %s244 = sadd.s32 %s242, %s243
      %s245 = smul.addr %s244, 4
      %s246 = scalar_lea.vmem %s0, %s245
      %s247 = sadd.s32 %s21, %s22
      %s248 = smul.u32 2, %s247
      %s249 = sadd.s32 %s21, %s22
      %s250 = smul.u32 2, %s249
      %p251 = scmp.lt.s32.totalorder %s20, 1
      %s252 = scalar_select %p251, %s20, 1
      %p253 = scmp.lt.s32.totalorder %s250, 1
      %s254 = scalar_select %p253, %s250, 1
      %s255 = smul.addr %s252, 2
      %s256 = sadd.s32 %s254, %s255
      %s257 = scalar_lea.vmem %s1, %s256
      %s258 = sadd.s32 %s21, %s22
      %s259 = smul.u32 2, %s258
      %s260 = sadd.s32 %s20, %s21
      %p261 = scmp.lt.s32.totalorder %s260, 1
      %s262 = scalar_select %p261, %s260, 1
      %s263 = smul.addr %s262, 4
      %s264 = scalar_lea.vmem %s2, %s263
      %s265 = sadd.s32 %s20, %s21
      %s266 = sadd.s32 %s20, %s21
      %p267 = scmp.lt.s32.totalorder %s266, 1
      %s268 = scalar_select %p267, %s266, 1
      %s269 = smul.addr %s268, 4
      %s270 = scalar_lea.vmem %s3, %s269
      %s271 = sadd.s32 %s20, %s21
      %p272 = scmp.eq.s32.totalorder %s22, 0
      // Predicated region
      $region29: #{dice_loss.1} parent=27 // pred_check
        %p273 = pneg %p272
      $region30: #{dice_loss.1} parent=27 // pred_check_branch
        %275 = sbr.rel (%p273) target = $region32
      $region31: #{dice_loss.1} parent=27 // pred_region
        %vm276 = vcmask 3072
        %277 = vst.msk [vmem:[#allocation2] sm:$0xf] %vm276, 0.0
        %278 = vst.msk [vmem:[#allocation3] sm:$0xf] %vm276, 0.0
      $region32: #{dice_loss.1} parent=27 // pred_fallthru
        _
      %v279 = vld [vmem:[%s246] sm:$0xff]
      %v280 = vld [vmem:[%s257] sm:$0x3]
      %v281 = vunpack.c.0.s8 %v280
      %v283 = vcombine.high %v279, %v279
      %vm285 = vcmask 1043456
      %v286 = vsel %vm285, %v279, -inf
      %v287 = vrot.slane %v286, 4
      %v288 = vmax.f32 %v286, %v287
      %v289 = vrot.slane %v288, 2
      %v290 = vmax.f32 %v288, %v289
      %v291 = vrot.slane %v290, 1
      %v292 = vmax.f32 %v290, %v291
      %v293 = vsel %vm285, %v283, -inf
      %v294 = vrot.slane %v293, 4
      %v295 = vmax.f32 %v293, %v294
      %v296 = vrot.slane %v295, 2
      %v297 = vmax.f32 %v295, %v296
      %v298 = vrot.slane %v297, 1
      %v299 = vmax.f32 %v297, %v298
      %v302 = vcombine.low %v292, %v299
      %v304 = vsub.f32 %v279, %v302
      %v305 = vmul.f32 %v304, 1.442695
      %v306 = vpow.pop %v305
      %v308 = vcombine.high %v306, %v306
      %v310 = vsel %vm285, %v306, 0.0
      %v311 = vrot.slane %v310, 4
      %v312 = vadd.f32 %v310, %v311
      %v313 = vrot.slane %v312, 2
      %v314 = vadd.f32 %v312, %v313
      %v315 = vrot.slane %v314, 1
      %v316 = vadd.f32 %v314, %v315
      %v317 = vsel %vm285, %v308, 0.0
      %v318 = vrot.slane %v317, 4
      %v319 = vadd.f32 %v317, %v318
      %v320 = vrot.slane %v319, 2
      %v321 = vadd.f32 %v319, %v320
      %v322 = vrot.slane %v321, 1
      %v323 = vadd.f32 %v321, %v322
      %v324 = vrcp.pop %v316
      %v325 = vrcp.pop %v323
      %v328 = vcombine.low %v324, %v325
      %v330 = vmul.f32 %v306, %v328
      %v331 = vlaneseq
      %v332 = vshrl.u32 %v331, 7
      %v333 = vlaneseq
      %v334 = vshrl.u32 %v333, 7
      %v335 = vsub.s32 0, %v334
      %v336 = vrot.slane %v281, %v335
      %v337 = vlaneseq
      %v338 = vshrl.u32 %v337, 7
      %v339 = vsub.s32 4, %v338
      %v340 = vrot.slane %v281, %v339
      %v341 = vlaneseq
      %v342 = vshrl.u32 %v341, 7
      %v343 = vsub.s32 0, %v342
      %v344 = vrot.slane %v336, %v343
      %v345 = vlaneseq
      %v346 = vshrl.u32 %v345, 7
      %v347 = vsub.s32 0, %v346
      %v348 = vrot.slane %v340, %v347
      %vm349 = vcmp.eq.s32.totalorder %v332, %v344
      %vm350 = vcmp.eq.s32.totalorder %v332, %v348
      %v351 = vsel %vm349, 1, 0
      %v352 = vsel %vm350, 1, 0
      %v353 = vcvt.s32.f32 %v351
      %v354 = vcvt.s32.f32 %v352
      %v355 = vld [vmem:[#allocation2] sm:$0xf]
      %v358 = vcombine.low %v353, %v354
      %v360 = vmul.f32 %v330, %v358
      %v362 = vcombine.high %v360, %v360
      %v364 = vsel %vm285, %v360, 0.0
      %v365 = vsel %vm285, %v362, 0.0
      %v366 = vadd.f32 %v364, %v365
      %367 = vadd.xlane.f32.xlu0 %v366
      %v368 = vpop.xlane.xlu0 %367
      %v369 = vadd.f32 %v355, %v368
      %vm370 = vcmask 3072
      %371 = vst.msk [vmem:[#allocation2] sm:$0xf] %vm370, %v369
      %v372 = vld [vmem:[#allocation3] sm:$0xf]
      %v373 = vmul.f32 %v330, %v330
      %v374 = vadd.f32 %v373, %v358
      %v376 = vcombine.high %v374, %v374
      %v378 = vsel %vm285, %v374, 0.0
      %v379 = vsel %vm285, %v376, 0.0
      %v380 = vadd.f32 %v378, %v379
      %381 = vadd.xlane.f32.xlu0 %v380
      %v382 = vpop.xlane.xlu0 %381
      %v383 = vadd.f32 %v372, %v382
      %384 = vst.msk [vmem:[#allocation3] sm:$0xf] %vm370, %v383
      // Predicated region
      $region33: #{dice_loss.1} parent=27 // pred_check
        %p385 = pneg %p272
      $region34: #{dice_loss.1} parent=27 // pred_check_branch
        %387 = sbr.rel (%p385) target = $region36
      $region35: #{dice_loss.1} parent=27 // pred_region
        %v388 = vld [vmem:[#allocation2] sm:$0xf]
        %390 = vset.pattern.permute.xlu0 0
        %391 = vperm.xlu0 %390, %v388
        %v392 = vpop.permute.xlu0 %391
        %394 = vst [vmem:[%s264] sm:$0xf] %v392
        %v395 = vld [vmem:[#allocation3] sm:$0xf]
        %397 = vset.pattern.permute.xlu0 0
        %398 = vperm.xlu0 %397, %v395
        %v399 = vpop.permute.xlu0 %398
        %401 = vst [vmem:[%s270] sm:$0xf] %v399
      $region36: #{dice_loss.1} parent=27 // pred_fallthru
        _
      %s402 = sadd.s32 %s20, %s21
      %p403 = scmp.lt.s32.totalorder %s402, 1
      %s404 = scalar_select %p403, %s402, 1
      %s405 = smul.addr %s404, 4
      %s406 = scalar_lea.vmem %s2, %s405
      %s407 = sadd.s32 %s20, %s21
      %p408 = scmp.lt.s32.totalorder %s407, 1
      %s409 = scalar_select %p408, %s407, 1
      %s410 = smul.addr %s409, 4
      %s411 = scalar_lea.vmem %s3, %s410
      // Predicated region
      $region37: #{dice_loss.1} parent=27 // pred_check
        %p412 = pneg %p114
      $region38: #{dice_loss.1} parent=27 // pred_check_branch
        %414 = sbr.rel (%p412) target = $region40
      $region39: #{dice_loss.1} parent=27 // pred_region
        %s415 = sadd.s32 %s20, %s21
      $region40: #{dice_loss.1} parent=27 // pred_fallthru
        _
      // Predicated region
      $region41: #{dice_loss.1} parent=27 // pred_check
        %p416 = pneg %p142
      $region42: #{dice_loss.1} parent=27 // pred_check_branch
        %418 = sbr.rel (%p416) target = $region44
      $region43: #{dice_loss.1} parent=27 // pred_region
        %s419 = sadd.s32 %s20, %s21
      $region44: #{dice_loss.1} parent=27 // pred_fallthru
        _
    $region28: #{dice_loss.1} parent=5 // pred_fallthru
      _
    %p420 = scmp.le.s32.totalorder 2, %s10
    // Predicated region
    $region45: #{dice_loss.1} parent=5 // pred_check
      %p421 = pneg %p420
    $region46: #{dice_loss.1} parent=5 // pred_check_branch
      %423 = sbr.rel (%p421) target = $region48
    $region47: #{dice_loss.1} parent=5 // pred_region
      %s424 = ssub.s32 %s10, 2
      // Predicated region
      $region49: #{dice_loss.1} parent=47 // pred_check
        %p425 = pneg %p120
      $region50: #{dice_loss.1} parent=47 // pred_check_branch
        %427 = sbr.rel (%p425) target = $region52
      $region51: #{dice_loss.1} parent=47 // pred_region
        %s428 = sadd.s32 %s23, %s24
        %p429 = scmp.lt.s32.totalorder %s428, 1
        %s430 = scalar_select %p429, %s428, 1
        %s431 = smul.addr %s430, 4
        %s432 = scalar_lea.vmem %s2, %s431
      $region52: #{dice_loss.1} parent=47 // pred_fallthru
        _
      // Predicated region
      $region53: #{dice_loss.1} parent=47 // pred_check
        %p433 = pneg %p148
      $region54: #{dice_loss.1} parent=47 // pred_check_branch
        %435 = sbr.rel (%p433) target = $region56
      $region55: #{dice_loss.1} parent=47 // pred_region
        %s436 = sadd.s32 %s23, %s24
        %p437 = scmp.lt.s32.totalorder %s436, 1
        %s438 = scalar_select %p437, %s436, 1
        %s439 = smul.addr %s438, 4
        %s440 = scalar_lea.vmem %s3, %s439
      $region56: #{dice_loss.1} parent=47 // pred_fallthru
        _
    $region48: #{dice_loss.1} parent=5 // pred_fallthru
      _
  $region6: #{dice_loss.1} parent=0 // loop_footer
    %s14 = sadd.s32 1, %s10
  $region7: #{dice_loss.1} parent=0 // loop_footer_branch
    %9 = sbr.rel target = $region3
  $region8: #{dice_loss.1} parent=0 // loop_exit
    _

</llo_original>
